<compile_context>
chip_gen: v7x
topology: tpu7x:2x2x1
jax: 0.10.0
libtpu: 0.0.40
codegen_flags: <defaults>
</compile_context>

<pallas_src>
import math
import functools

import jax
import jax.numpy as jnp
from jax import lax
from jax.experimental import pallas as pl
from jax.experimental.pallas import tpu as pltpu


def _round_up(x, m):
    return (x + m - 1) // m * m


def _arc_margin_kernel(x_ref, w_ref, rx_ref, rw_ref, label_ref, out_ref, *,
                       s, cos_m, sin_m, th, mm, easy_margin, use_label):
    # Raw dot on the MXU: bf16 inputs, f32 accumulation.
    raw = lax.dot_general(x_ref[...], w_ref[...], (((1,), (1,)), ((), ())),
                          preferred_element_type=jnp.float32)
    # Post-scale normalization: (TB,TC) * (TB,1) * (1,TC)
    cosine = raw * rx_ref[...] * rw_ref[...]

    if not use_label:
        # label is None: output is just the cosine similarities (no margin/scale).
        out_ref[...] = cosine.astype(out_ref.dtype)
        return

    # Clamp inside the sqrt so a cosine a few ULPs past +/-1 cannot produce NaN.
    sine = jnp.sqrt(jnp.maximum(1.0 - cosine * cosine, 0.0))
    phi = cosine * cos_m - sine * sin_m
    if easy_margin:
        phi = jnp.where(cosine > 0.0, phi, cosine)
    else:
        phi = jnp.where(cosine > th, phi, cosine - mm)

    tb, tc = cosine.shape
    class_base = pl.program_id(1) * tc
    class_ids = class_base + lax.broadcasted_iota(jnp.int32, (tb, tc), 1)
    one_hot = (class_ids == label_ref[...]).astype(jnp.float32)  # label_ref: (TB,1)

    out = cosine + one_hot * (phi - cosine)
    out_ref[...] = (out * s).astype(out_ref.dtype)


@functools.partial(
    jax.jit,
    static_argnames=("s", "cos_m", "sin_m", "th", "mm",
                     "easy_margin", "use_label", "tb", "tc"))
def arc_margin_forward(x, weight, label, *, s, cos_m, sin_m, th, mm,
                       easy_margin, use_label, tb, tc):
    B, D = x.shape
    C, Dw = weight.shape
    assert D == Dw

    b_pad = _round_up(B, tb)
    c_pad = _round_up(C, tc)
    d_pad = _round_up(D, 128)

    xf = x.astype(jnp.float32)
    wf = weight.astype(jnp.float32)

    # F.normalize semantics: v / max(||v||_2, 1e-12)  ->  inverse norms in f32.
    rx = 1.0 / jnp.maximum(
        jnp.sqrt(jnp.sum(xf * xf, axis=1, keepdims=True)), 1e-12)   # (B, 1)
    rw = 1.0 / jnp.maximum(
        jnp.sqrt(jnp.sum(wf * wf, axis=1, keepdims=True)), 1e-12)   # (C, 1)

    # bf16 matmul operands, zero-padded to aligned shapes.
    x_p = jnp.zeros((b_pad, d_pad), jnp.bfloat16).at[:B, :D].set(
        x.astype(jnp.bfloat16))
    w_p = jnp.zeros((c_pad, d_pad), jnp.bfloat16).at[:C, :D].set(
        weight.astype(jnp.bfloat16))
    rx_p = jnp.zeros((b_pad, 1), jnp.float32).at[:B, :].set(rx)
    rw_p = jnp.zeros((1, c_pad), jnp.float32).at[:, :C].set(rw.T)
    lab_p = jnp.full((b_pad, 1), -1, jnp.int32).at[:B, 0].set(
        label.astype(jnp.int32).reshape(B))

    kernel = functools.partial(
        _arc_margin_kernel, s=s, cos_m=cos_m, sin_m=sin_m, th=th, mm=mm,
        easy_margin=easy_margin, use_label=use_label)

    grid = (b_pad // tb, c_pad // tc)

    # VMEM budget: double-buffered bf16 input tiles + f32 output tile (+ headroom).
    vmem_bytes = 2 * (tb * d_pad + tc * d_pad) * 2 + 2 * tb * tc * 4
    vmem_bytes += 2 * (tb * 4 + tc * 4 + tb * 4)
    vmem_limit = int(min(max(vmem_bytes * 2, 32 << 20), 60 << 20))

    out_p = pl.pallas_call(
        kernel,
        out_shape=jax.ShapeDtypeStruct((b_pad, c_pad), jnp.float32),
        grid=grid,
        in_specs=[
            pl.BlockSpec((tb, d_pad), lambda i, j: (i, 0)),   # x tile
            pl.BlockSpec((tc, d_pad), lambda i, j: (j, 0)),   # weight tile (streamed)
            pl.BlockSpec((tb, 1), lambda i, j: (i, 0)),       # 1/||x|| per row
            pl.BlockSpec((1, tc), lambda i, j: (0, j)),       # 1/||w|| per class
            pl.BlockSpec((tb, 1), lambda i, j: (i, 0)),       # labels per row
        ],
        out_specs=pl.BlockSpec((tb, tc), lambda i, j: (i, j)),
        compiler_params=pltpu.CompilerParams(
            dimension_semantics=("parallel", "parallel"),
            vmem_limit_bytes=vmem_limit),
    )(x_p, w_p, rx_p, rw_p, lab_p)

    return out_p[:B, :C]


class ArcMarginProductPallas:
    """JAX/Pallas re-implementation of the PyTorch ArcMarginProduct module."""

    def __init__(self, in_features, out_features, s=30.0, m=0.5,
                 easy_margin=False, key=None):
        self.in_features = in_features
        self.out_features = out_features
        self.s = float(s)
        self.m = float(m)
        self.easy_margin = easy_margin
        self.cos_m = math.cos(m)
        self.sin_m = math.sin(m)
        self.th = math.cos(math.pi - m)
        self.mm = math.sin(math.pi - m) * m

        # nn.init.xavier_uniform_ on a (out_features, in_features) tensor.
        if key is None:
            key = jax.random.PRNGKey(0)
        limit = math.sqrt(6.0 / (in_features + out_features))
        self.weight = jax.random.uniform(
            key, (out_features, in_features), jnp.float32, -limit, limit)

    def __call__(self, x, label=None, *, tb=None, tc=None):
        B = x.shape[0]
        C = self.out_features
        use_label = label is not None
        if label is None:
            label_arr = jnp.zeros((B,), jnp.int32)       # dummy, unused in kernel
        else:
            label_arr = jnp.asarray(label, jnp.int32).reshape(B)

        # Generation-safe default tiles: 128-aligned class tiles, 16-aligned batch
        # tiles; fits v7x's 32 MiB scoped VMEM and keeps v5e/v6e well fed.
        if tb is None:
            tb = min(128, _round_up(B, 16))
        if tc is None:
            tc = min(512, _round_up(C, 128))

        return arc_margin_forward(
            x, self.weight, label_arr,
            s=self.s, cos_m=self.cos_m, sin_m=self.sin_m, th=self.th,
            mm=self.mm, easy_margin=self.easy_margin,
            use_label=use_label, tb=tb, tc=tc)


def _reference(weight, s, cos_m, sin_m, th, mm, easy_margin, x, label=None):
    """Pure-JAX reference matching the PyTorch forward (MXU-precision matmul)."""
    xf = x.astype(jnp.float32)
    wf = weight.astype(jnp.float32)
    rx = 1.0 / jnp.maximum(jnp.linalg.norm(xf, axis=1, keepdims=True), 1e-12)
    rw = 1.0 / jnp.maximum(jnp.linalg.norm(wf, axis=1, keepdims=True), 1e-12)
    raw = jnp.dot(x.astype(jnp.bfloat16), weight.astype(jnp.bfloat16).T,
                  preferred_element_type=jnp.float32)
    cosine = raw * rx * rw.T
    if label is None:
        return cosine
    sine = jnp.sqrt(jnp.maximum(1.0 - cosine ** 2, 0.0))
    phi = cosine * cos_m - sine * sin_m
    if easy_margin:
        phi = jnp.where(cosine > 0, phi, cosine)
    else:
        phi = jnp.where(cosine > th, phi, cosine - mm)
    one_hot = jax.nn.one_hot(label, weight.shape[0], dtype=jnp.float32)
    return (one_hot * phi + (1.0 - one_hot) * cosine) * s


if __name__ == "__main__":
    key = jax.random.PRNGKey(0)
    k_w, k_x, k_l, k_w2, k_x2, k_l2 = jax.random.split(key, 6)

    # ---- Test 1: small shapes, single-tile grid (training + inference paths) ----
    B, Din, Cout = 8, 32, 16
    mod = ArcMarginProductPallas(Din, Cout, s=30.0, m=0.5,
                                 easy_margin=False, key=k_w)
    x = jax.random.normal(k_x, (B, Din), jnp.float32)
    label = jax.random.randint(k_l, (B,), 0, Cout, jnp.int32)

    out = jax.block_until_ready(mod(x, label))
    ref = _reference(mod.weight, mod.s, mod.cos_m, mod.sin_m, mod.th, mod.mm,
                     mod.easy_margin, x, label)
    assert out.shape == (B, Cout)
    assert jnp.allclose(out, ref, atol=2e-3, rtol=2e-3)

    out_nl = jax.block_until_ready(mod(x, None))
    ref_nl = _reference(mod.weight, mod.s, mod.cos_m, mod.sin_m, mod.th, mod.mm,
                        mod.easy_margin, x, None)
    assert out_nl.shape == (B, Cout)
    assert jnp.allclose(out_nl, ref_nl, atol=1e-4, rtol=1e-3)

    # ---- Test 2: unaligned shapes forcing a multi-tile (2 x 3) grid ----
    B2, Din2, Cout2 = 24, 72, 300
    mod2 = ArcMarginProductPallas(Din2, Cout2, s=30.0, m=0.5,
                                  easy_margin=False, key=k_w2)
    x2 = jax.random.normal(k_x2, (B2, Din2), jnp.float32)
    label2 = jax.random.randint(k_l2, (B2,), 0, Cout2, jnp.int32)

    out2 = jax.block_until_ready(mod2(x2, label2, tb=16, tc=128))
    ref2 = _reference(mod2.weight, mod2.s, mod2.cos_m, mod2.sin_m, mod2.th,
                      mod2.mm, mod2.easy_margin, x2, label2)
    assert out2.shape == (B2, Cout2)
    assert jnp.allclose(out2, ref2, atol=2e-3, rtol=2e-3)

    print("KERNEL_OK")
</pallas_src>

<mosaic_0001>
module attributes {stable_mosaic.version = 11 : i64} {
  func.func @_arc_margin_kernel(%arg0: i32, %arg1: i32, %arg2: memref<16x128xbf16, #tpu.memory_space<vmem>>, %arg3: memref<128x128xbf16, #tpu.memory_space<vmem>>, %arg4: memref<16x1xf32, #tpu.memory_space<vmem>>, %arg5: memref<1x128xf32, #tpu.memory_space<vmem>>, %arg6: memref<16x1xi32, #tpu.memory_space<vmem>>, %arg7: memref<16x128xf32, #tpu.memory_space<vmem>>) attributes {dimension_semantics = [#tpu.dimension_semantics<parallel>, #tpu.dimension_semantics<parallel>], iteration_bounds = array<i64: 1, 1>, scalar_prefetch = 0 : i64, scratch_operands = 0 : i64, tpu.core_type = #tpu.core_type<tc>, window_params = [{transform_indices = @transform_0, window_bounds = array<i64: 16, 128>}, {transform_indices = @transform_1, window_bounds = array<i64: 128, 128>}, {transform_indices = @transform_2, window_bounds = array<i64: 16, 1>}, {transform_indices = @transform_3, window_bounds = array<i64: 1, 128>}, {transform_indices = @transform_4, window_bounds = array<i64: 16, 1>}, {transform_indices = @transform_5, window_bounds = array<i64: 16, 128>}]} {
    %c0 = arith.constant 0 : index
    %c0_0 = arith.constant 0 : index
    %0 = vector.load %arg2[%c0, %c0_0] : memref<16x128xbf16, #tpu.memory_space<vmem>>, vector<16x128xbf16>
    %c0_1 = arith.constant 0 : index
    %c0_2 = arith.constant 0 : index
    %1 = vector.load %arg3[%c0_1, %c0_2] : memref<128x128xbf16, #tpu.memory_space<vmem>>, vector<128x128xbf16>
    %cst = arith.constant dense<0.000000e+00> : vector<16x128xf32>
    %2 = tpu.matmul %0, %1, %cst {dimension_numbers = #tpu.dot_dimension_numbers<[1], [1], [0], [0], [0, 0, 1, 0], [], []>} : vector<16x128xbf16>, vector<128x128xbf16>, vector<16x128xf32> -> vector<16x128xf32>
    %c0_3 = arith.constant 0 : index
    %c0_4 = arith.constant 0 : index
    %3 = vector.load %arg4[%c0_3, %c0_4] : memref<16x1xf32, #tpu.memory_space<vmem>>, vector<16x1xf32>
    %4 = vector.broadcast %3 : vector<16x1xf32> to vector<16x128xf32>
    %5 = arith.mulf %2, %4 : vector<16x128xf32>
    %c0_5 = arith.constant 0 : index
    %c0_6 = arith.constant 0 : index
    %6 = vector.load %arg5[%c0_5, %c0_6] : memref<1x128xf32, #tpu.memory_space<vmem>>, vector<1x128xf32>
    %7 = vector.broadcast %6 : vector<1x128xf32> to vector<16x128xf32>
    %8 = arith.mulf %5, %7 : vector<16x128xf32>
    %9 = arith.mulf %8, %8 : vector<16x128xf32>
    %cst_7 = arith.constant 1.000000e+00 : f32
    %10 = vector.broadcast %cst_7 : f32 to vector<16x128xf32>
    %11 = arith.subf %10, %9 : vector<16x128xf32>
    %cst_8 = arith.constant 0.000000e+00 : f32
    %12 = vector.broadcast %cst_8 : f32 to vector<16x128xf32>
    %13 = arith.maximumf %11, %12 : vector<16x128xf32>
    %14 = math.sqrt %13 : vector<16x128xf32>
    %cst_9 = arith.constant 0.87758255 : f32
    %15 = vector.broadcast %cst_9 : f32 to vector<16x128xf32>
    %16 = arith.mulf %8, %15 : vector<16x128xf32>
    %cst_10 = arith.constant 0.47942555 : f32
    %17 = vector.broadcast %cst_10 : f32 to vector<16x128xf32>
    %18 = arith.mulf %14, %17 : vector<16x128xf32>
    %19 = arith.subf %16, %18 : vector<16x128xf32>
    %cst_11 = arith.constant -0.87758255 : f32
    %20 = vector.broadcast %cst_11 : f32 to vector<16x128xf32>
    %21 = arith.cmpf ogt, %8, %20 : vector<16x128xf32>
    %cst_12 = arith.constant 0.239712775 : f32
    %22 = vector.broadcast %cst_12 : f32 to vector<16x128xf32>
    %23 = arith.subf %8, %22 : vector<16x128xf32>
    %24 = arith.select %21, %19, %23 : vector<16x128xi1>, vector<16x128xf32>
    %c128_i32 = arith.constant 128 : i32
    %25 = arith.muli %arg1, %c128_i32 : i32
    %26 = tpu.iota {dimensions = array<i32: 1>} : vector<16x128xi32>
    %27 = vector.broadcast %25 : i32 to vector<16x128xi32>
    %28 = arith.addi %27, %26 : vector<16x128xi32>
    %c0_13 = arith.constant 0 : index
    %c0_14 = arith.constant 0 : index
    %29 = vector.load %arg6[%c0_13, %c0_14] : memref<16x1xi32, #tpu.memory_space<vmem>>, vector<16x1xi32>
    %30 = vector.broadcast %29 : vector<16x1xi32> to vector<16x128xi32>
    %31 = arith.cmpi eq, %28, %30 : vector<16x128xi32>
    %32 = arith.extui %31 : vector<16x128xi1> to vector<16x128xi32>
    %33 = arith.sitofp %32 : vector<16x128xi32> to vector<16x128xf32>
    %34 = arith.subf %24, %8 : vector<16x128xf32>
    %35 = arith.mulf %33, %34 : vector<16x128xf32>
    %36 = arith.addf %8, %35 : vector<16x128xf32>
    %cst_15 = arith.constant 3.000000e+01 : f32
    %37 = vector.broadcast %cst_15 : f32 to vector<16x128xf32>
    %38 = arith.mulf %36, %37 : vector<16x128xf32>
    %c0_16 = arith.constant 0 : index
    %c0_17 = arith.constant 0 : index
    %39 = vector.load %arg7[%c0_16, %c0_17] : memref<16x128xf32, #tpu.memory_space<vmem>>, vector<16x128xf32>
    tpu.vector_store %arg7[%c0_16, %c0_17], %38 {strides = array<i32>} : memref<16x128xf32, #tpu.memory_space<vmem>>, vector<16x128xf32>,
    return
  }
  func.func @transform_0(%arg0: i32, %arg1: i32) -> (i32, i32) {
    %c0_i32 = arith.constant 0 : i32
    %c0_i32_0 = arith.constant 0 : i32
    return %arg0, %c0_i32 : i32, i32
  }
  func.func @transform_1(%arg0: i32, %arg1: i32) -> (i32, i32) {
    %c0_i32 = arith.constant 0 : i32
    %c0_i32_0 = arith.constant 0 : i32
    return %arg1, %c0_i32 : i32, i32
  }
  func.func @transform_2(%arg0: i32, %arg1: i32) -> (i32, i32) {
    %c0_i32 = arith.constant 0 : i32
    %c0_i32_0 = arith.constant 0 : i32
    return %arg0, %c0_i32 : i32, i32
  }
  func.func @transform_3(%arg0: i32, %arg1: i32) -> (i32, i32) {
    %c0_i32 = arith.constant 0 : i32
    %c0_i32_0 = arith.constant 0 : i32
    return %c0_i32, %arg1 : i32, i32
  }
  func.func @transform_4(%arg0: i32, %arg1: i32) -> (i32, i32) {
    %c0_i32 = arith.constant 0 : i32
    %c0_i32_0 = arith.constant 0 : i32
    return %arg0, %c0_i32 : i32, i32
  }
  func.func @transform_5(%arg0: i32, %arg1: i32) -> (i32, i32) {
    %c0_i32 = arith.constant 0 : i32
    return %arg0, %arg1 : i32, i32
  }
}

</mosaic_0001>

<llo_original>
// kernel: arc_margin_forward.1
$region0: #{arc_margin_forward.1}
  #allocation0 [shape = 'u32[]', space=smem, size = 0x4, offset = 0x4, fixed_abs, tag = 'smem constant byte address 0x4 - core index']
  #allocation1 [shape = 'u32[144,128]{1,0:T(1,128)}', space=vmem, size = 0x12000, scoped, tag = 'internal scratch']
  %s0 = inlined_call_operand.vmem [shape: bf16[16,128], index: 0, kind: input, shape index: {}]
  %s1 = inlined_call_operand.vmem [shape: bf16[128,128], index: 1, kind: input, shape index: {}]
  %s2 = inlined_call_operand.vmem [shape: f32[16,1], index: 2, kind: input, shape index: {}]
  %s3 = inlined_call_operand.vmem [shape: f32[1,128], index: 3, kind: input, shape index: {}]
  %s4 = inlined_call_operand.vmem [shape: s32[16,1], index: 4, kind: input, shape index: {}]
  %s5 = inlined_call_operand.vmem [shape: f32[16,128], index: 5, kind: output, shape index: {}]
  %s6 = sld [smem:[#allocation0]]
  $region30: #{arc_margin_forward.1} parent=0
    _
  %s8 = ssub.s32 1, %s6
  %s9 = scalar_select 0, %s8, %s6
  // Predicated region
  $region2: #{arc_margin_forward.1} parent=0 // pred_check
    _
  $region3: #{arc_margin_forward.1} parent=0 // pred_check_branch
    %11 = sbr.rel (0) target = $region5
  $region4: #{arc_margin_forward.1} parent=0 // pred_region
    _
  $region5: #{arc_margin_forward.1} parent=0 // pred_fallthru
    _
  // Predicated region
  $region6: #{arc_margin_forward.1} parent=0 // pred_check
    _
  $region7: #{arc_margin_forward.1} parent=0 // pred_check_branch
    %13 = sbr.rel (0) target = $region9
  $region8: #{arc_margin_forward.1} parent=0 // pred_region
    _
  $region9: #{arc_margin_forward.1} parent=0 // pred_fallthru
    _
  // Predicated region
  $region10: #{arc_margin_forward.1} parent=0 // pred_check
    _
  $region11: #{arc_margin_forward.1} parent=0 // pred_check_branch
    %15 = sbr.rel (0) target = $region13
  $region12: #{arc_margin_forward.1} parent=0 // pred_region
    _
  $region13: #{arc_margin_forward.1} parent=0 // pred_fallthru
    _
  // Predicated region
  $region14: #{arc_margin_forward.1} parent=0 // pred_check
    _
  $region15: #{arc_margin_forward.1} parent=0 // pred_check_branch
    %17 = sbr.rel (0) target = $region17
  $region16: #{arc_margin_forward.1} parent=0 // pred_region
    _
  $region17: #{arc_margin_forward.1} parent=0 // pred_fallthru
    _
  // Predicated region
  $region18: #{arc_margin_forward.1} parent=0 // pred_check
    _
  $region19: #{arc_margin_forward.1} parent=0 // pred_check_branch
    %19 = sbr.rel (0) target = $region21
  $region20: #{arc_margin_forward.1} parent=0 // pred_region
    _
  $region21: #{arc_margin_forward.1} parent=0 // pred_fallthru
    _
  %v21 = vld [vmem:[%s0] sm:$0xf]
  %v22 = vld [vmem:[%s0 + $0x4] sm:$0xf]
  %v23 = vld [vmem:[%s1] sm:$0xf]
  %v24 = vld [vmem:[%s1 + $0x4] sm:$0xf]
  %v25 = vld [vmem:[%s1 + $0x8] sm:$0xf]
  %v26 = vld [vmem:[%s1 + $0xc] sm:$0xf]
  %v27 = vld [vmem:[%s1 + $0x10] sm:$0xf]
  %v28 = vld [vmem:[%s1 + $0x14] sm:$0xf]
  %v29 = vld [vmem:[%s1 + $0x18] sm:$0xf]
  %v30 = vld [vmem:[%s1 + $0x1c] sm:$0xf]
  %v31 = vld [vmem:[%s1 + $0x20] sm:$0xf]
  %v32 = vld [vmem:[%s1 + $0x24] sm:$0xf]
  %v33 = vld [vmem:[%s1 + $0x28] sm:$0xf]
  %v34 = vld [vmem:[%s1 + $0x2c] sm:$0xf]
  %v35 = vld [vmem:[%s1 + $0x30] sm:$0xf]
  %v36 = vld [vmem:[%s1 + $0x34] sm:$0xf]
  %v37 = vld [vmem:[%s1 + $0x38] sm:$0xf]
  %v38 = vld [vmem:[%s1 + $0x3c] sm:$0xf]
  %v41 = vunpack.c.l.b16 %v21
  %v42 = vunpack.c.l.b16 %v22
  %v43 = vpack.c.b16 %v42, %v41
  %v61 = vunpack.c.l.b16 %v23
  %v62 = vunpack.c.l.b16 %v24
  %v63 = vunpack.c.l.b16 %v25
  %v64 = vunpack.c.l.b16 %v26
  %v65 = vunpack.c.l.b16 %v27
  %v66 = vunpack.c.l.b16 %v28
  %v67 = vunpack.c.l.b16 %v29
  %v68 = vunpack.c.l.b16 %v30
  %v69 = vunpack.c.l.b16 %v31
  %v70 = vunpack.c.l.b16 %v32
  %v71 = vunpack.c.l.b16 %v33
  %v72 = vunpack.c.l.b16 %v34
  %v73 = vunpack.c.l.b16 %v35
  %v74 = vunpack.c.l.b16 %v36
  %v75 = vunpack.c.l.b16 %v37
  %v76 = vunpack.c.l.b16 %v38
  %v77 = vpack.c.b16 %v62, %v61
  %v78 = vpack.c.b16 %v64, %v63
  %v79 = vpack.c.b16 %v66, %v65
  %v80 = vpack.c.b16 %v68, %v67
  %v81 = vpack.c.b16 %v70, %v69
  %v82 = vpack.c.b16 %v72, %v71
  %v83 = vpack.c.b16 %v74, %v73
  %v84 = vpack.c.b16 %v76, %v75
  %93 = vmatprep.subr.bf16.mxu0 0
  %94 = vmatpush1.bf16.xpose.msra.mxu0 %v77
  %95 = vmatprep.subr.bf16.mxu0 0
  %96 = vmatpush1.bf16.xpose.msra.mxu0 %v78
  %97 = vmatprep.subr.bf16.mxu0 0
  %98 = vmatpush1.bf16.xpose.msra.mxu0 %v79
  %99 = vmatprep.subr.bf16.mxu0 0
  %100 = vmatpush1.bf16.xpose.msra.mxu0 %v80
  %101 = vmatprep.subr.bf16.mxu0 0
  %102 = vmatpush1.bf16.xpose.msra.mxu0 %v81
  %103 = vmatprep.subr.bf16.mxu0 0
  %104 = vmatpush1.bf16.xpose.msra.mxu0 %v82
  %105 = vmatprep.subr.bf16.mxu0 0
  %106 = vmatpush1.bf16.xpose.msra.mxu0 %v83
  %107 = vmatprep.subr.bf16.mxu0 0
  %108 = vmatpush1.bf16.xpose.msra.mxu0 %v84
  %109 = vmatprep.subr.bf16.mxu0 0
  %110 = vmatpush1.bf16.xpose.msra.mxu0 0
  %111 = vmatprep.subr.bf16.mxu0 0
  %112 = vmatpush1.bf16.xpose.msra.mxu0 0
  %113 = vmatprep.subr.bf16.mxu0 0
  %114 = vmatpush1.bf16.xpose.msra.mxu0 0
  %115 = vmatprep.subr.bf16.mxu0 0
  %116 = vmatpush1.bf16.xpose.msra.mxu0 0
  %117 = vmatprep.subr.bf16.mxu0 0
  %118 = vmatpush1.bf16.xpose.msra.mxu0 0
  %119 = vmatprep.subr.bf16.mxu0 0
  %120 = vmatpush1.bf16.xpose.msra.mxu0 0
  %121 = vmatprep.subr.bf16.mxu0 0
  %122 = vmatpush1.bf16.xpose.msra.mxu0 0
  %123 = vmatprep.subr.bf16.mxu0 0
  %124 = vmatpush1.bf16.xpose.msra.mxu0 0
  %125 = vmatprep.mubr.bf16.mxu0 0
  %126 = vmatmul.mubr.bf16.gmra.mrb[0].mxu0 %v43
  %v127 = vpop.f32.mrb[0].mxu0
  %v128 = vadd.f32 0.0, %v127
  %v129 = vpop.f32.mrb[0].mxu0
  %v130 = vpop.f32.mrb[0].mxu0
  %v131 = vadd.f32 0.0, %v130
  %v132 = vpop.f32.mrb[0].mxu0
  %133 = vdwg.mxu0
  %v134 = vld [vmem:[%s2] sm:$0xff]
  %v135 = vld [vmem:[%s2 + $0x8] sm:$0xff]
  %137 = vset.pattern.permute.xlu0 0
  %138 = vperm.xlu0 %137, %v134
  %v139 = vpop.permute.xlu0 %138
  %142 = vset.pattern.permute.xlu0 0
  %143 = vperm.xlu0 %142, %v135
  %v144 = vpop.permute.xlu0 %143
  %v146 = vmul.f32 %v128, %v139
  %v147 = vmul.f32 %v131, %v144
  %v148 = vld [vmem:[%s3] sm:$0x1]
  %v150 = vlaneseq
  %v151 = vshrl.u32 %v150, 7
  %v152 = vsub.s32 0, %v151
  %v153 = vrot.slane %v148, %v152
  %v155 = vmul.f32 %v146, %v153
  %v156 = vmul.f32 %v147, %v153
  %v157 = vmul.f32 %v155, %v155
  %v158 = vmul.f32 %v156, %v156
  %v159 = vsub.f32 1.0, %v157
  %v160 = vsub.f32 1.0, %v158
  %v161 = vmax.f32 %v159, 0.0
  %v162 = vmax.f32 %v160, 0.0
  %v163 = vrsqrt.pop %v161
  %v164 = vmul.f32 %v161, %v163
  %vm165 = vcmp.eq.f32.partialorder %v161, inf
  %v166 = vsel %vm165, %v161, %v164
  %vm167 = vcmp.eq.f32.partialorder %v161, 0.0
  %v168 = vand.u32 %v161, 2147483648
  %v169 = vsel %vm167, %v168, %v166
  %v170 = vrsqrt.pop %v162
  %v171 = vmul.f32 %v162, %v170
  %vm172 = vcmp.eq.f32.partialorder %v162, inf
  %v173 = vsel %vm172, %v162, %v171
  %vm174 = vcmp.eq.f32.partialorder %v162, 0.0
  %v175 = vand.u32 %v162, 2147483648
  %v176 = vsel %vm174, %v175, %v173
  %v177 = vmul.f32 %v155, 0.87758255
  %v178 = vmul.f32 %v156, 0.87758255
  %v179 = vmul.f32 %v169, 0.47942555
  %v180 = vmul.f32 %v176, 0.47942555
  %v181 = vsub.f32 %v177, %v179
  %v182 = vsub.f32 %v178, %v180
  %vm183 = vcmp.gt.f32.partialorder %v155, -0.87758255
  %vm184 = vcmp.gt.f32.partialorder %v156, -0.87758255
  %v185 = vsub.f32 %v155, 0.23971277
  %v186 = vsub.f32 %v156, 0.23971277
  %v187 = vsel %vm183, %v181, %v185
  %v188 = vsel %vm184, %v182, %v186
  %s189 = smul.u32 0, 128
  %v190 = vlaneseq
  %v191 = vand.u32 %v190, 127
  %v192 = vstv %s189
  %v193 = vadd.s32 %v192, %v191
  %v194 = vld [vmem:[%s4] sm:$0xff]
  %v195 = vld [vmem:[%s4 + $0x8] sm:$0xff]
  %196 = vset.pattern.permute.xlu0 0
  %197 = vperm.xlu0 %196, %v194
  %v198 = vpop.permute.xlu0 %197
  %199 = vset.pattern.permute.xlu0 0
  %200 = vperm.xlu0 %199, %v195
  %v201 = vpop.permute.xlu0 %200
  %vm202 = vcmp.eq.s32.totalorder %v193, %v198
  %vm203 = vcmp.eq.s32.totalorder %v193, %v201
  %v204 = vsel %vm202, 1, 0
  %v205 = vsel %vm203, 1, 0
  %v206 = vcvt.s32.f32 %v204
  %v207 = vcvt.s32.f32 %v205
  %v208 = vsub.f32 %v187, %v155
  %v209 = vsub.f32 %v188, %v156
  %v210 = vmul.f32 %v206, %v208
  %v211 = vmul.f32 %v207, %v209
  %v212 = vadd.f32 %v155, %v210
  %v213 = vadd.f32 %v156, %v211
  %v214 = vmul.f32 %v212, 30.0
  %v215 = vmul.f32 %v213, 30.0
  %216 = vst [vmem:[%s5] sm:$0xff] %v214
  %217 = vst [vmem:[%s5 + $0x8] sm:$0xff] %v215
  // Predicated region
  $region22: #{arc_margin_forward.1} parent=0 // pred_check
    _
  $region23: #{arc_margin_forward.1} parent=0 // pred_check_branch
    %219 = sbr.rel (0) target = $region25
  $region24: #{arc_margin_forward.1} parent=0 // pred_region
    _
  $region25: #{arc_margin_forward.1} parent=0 // pred_fallthru
    _
  // Predicated region
  $region26: #{arc_margin_forward.1} parent=0 // pred_check
    _
  $region27: #{arc_margin_forward.1} parent=0 // pred_check_branch
    %221 = sbr.rel (0) target = $region29
  $region28: #{arc_margin_forward.1} parent=0 // pred_region
    _
  $region29: #{arc_margin_forward.1} parent=0 // pred_fallthru
    _

</llo_original>
